<compile_context>
chip_gen: v7x
topology: tpu7x:2x2x1
jax: 0.10.0
libtpu: 0.0.40
codegen_flags: <defaults>
</compile_context>

<pallas_src>
import functools

import jax
import jax.numpy as jnp
from jax.experimental import pallas as pl
from jax.experimental.pallas import tpu as pltpu


def matmul_silu_kernel(x_ref, w_ref, o_ref):
    """One output tile: full-K matmul on the MXU + fused SiLU epilogue (f32)."""
    a = jnp.dot(x_ref[...], w_ref[...], preferred_element_type=jnp.float32)
    # SiLU(a) = a * sigmoid(a); keep the epilogue in f32 (safe on v5e too).
    o_ref[...] = (a * jax.nn.sigmoid(a)).astype(o_ref.dtype)


def _round_up(x, m):
    return (x + m - 1) * 0 + ((x + m - 1) // m) * m


@functools.partial(jax.jit, static_argnames=("tm",))
def netb_forward(x, w, *, tm=256):
    """NetB.forward: SiLU(x @ w).  x: (..., 512), w: (512, 128)."""
    K, N = w.shape
    lead = x.shape[:-1]
    x2d = x.reshape(-1, K)
    M = x2d.shape[0]

    # Pick an M tile: at most `tm`, at least 8 (sublane granularity), and no
    # bigger than the (8-rounded) problem itself so tiny inputs don't pad much.
    tm_eff = min(tm, max(8, _round_up(M, 8)))
    m_pad = _round_up(M, tm_eff)
    if m_pad != M:
        x2d = jnp.pad(x2d, ((0, m_pad - M), (0, 0)))

    grid_m = m_pad // tm_eff

    cost = pl.CostEstimate(
        flops=2 * M * K * N,
        transcendentals=M * N,  # sigmoid exp per output element
        bytes_accessed=(M * K + K * N + M * N) * x.dtype.itemsize,
    )

    out2d = pl.pallas_call(
        matmul_silu_kernel,
        out_shape=jax.ShapeDtypeStruct((m_pad, N), x.dtype),
        grid_spec=pltpu.PrefetchScalarGridSpec(
            num_scalar_prefetch=0,
            grid=(grid_m,),
            in_specs=[
                # x: one (tm, K) slab per grid step, full K contraction.
                pl.BlockSpec((tm_eff, K), lambda i: (i, 0)),
                # w: full (K, N) array, constant block index -> resident in
                # VMEM, DMA'd once for the whole kernel.
                pl.BlockSpec((K, N), lambda i: (0, 0)),
            ],
            out_specs=pl.BlockSpec((tm_eff, N), lambda i: (i, 0)),
        ),
        compiler_params=pltpu.CompilerParams(
            dimension_semantics=("parallel",),
        ),
        cost_estimate=cost,
    )(x2d, w)

    if m_pad != M:
        out2d = out2d[:M]
    return out2d.reshape(*lead, N)


if __name__ == "__main__":
    key = jax.random.PRNGKey(0)
    kx, kw = jax.random.split(key)

    # Module __init__ fixes the weight shape at (512, 128).
    K, N = 512, 128
    batch, seq = 2, 8

    x = jax.random.normal(kx, (batch, seq, K), dtype=jnp.float32)
    w = jax.random.normal(kw, (K, N), dtype=jnp.float32) * 0.02  # deterministic "weight"

    out = netb_forward(x, w)
    jax.block_until_ready(out)

    # Reference check (plain JAX) to make sure semantics match.
    ref = jax.nn.silu(jnp.matmul(x, w))
    assert out.shape == (batch, seq, N)
    assert jnp.allclose(out, ref, atol=1e-4, rtol=1e-4)

    print("KERNEL_OK")
</pallas_src>

<mosaic_0001>
module attributes {stable_mosaic.version = 11 : i64} {
  func.func @matmul_silu_kernel(%arg0: i32, %arg1: memref<16x512xf32, #tpu.memory_space<vmem>>, %arg2: memref<512x128xf32, #tpu.memory_space<vmem>>, %arg3: memref<16x128xf32, #tpu.memory_space<vmem>>) attributes {dimension_semantics = [#tpu.dimension_semantics<parallel>], iteration_bounds = array<i64: 1>, scalar_prefetch = 0 : i64, scratch_operands = 0 : i64, tpu.core_type = #tpu.core_type<tc>, window_params = [{transform_indices = @transform_0, window_bounds = array<i64: 16, 512>}, {pipeline_mode = #tpu.pipeline_mode<synchronous>, transform_indices = @transform_1, window_bounds = array<i64: 512, 128>}, {transform_indices = @transform_2, window_bounds = array<i64: 16, 128>}]} {
    %c0 = arith.constant 0 : index
    %c0_0 = arith.constant 0 : index
    %0 = vector.load %arg1[%c0, %c0_0] : memref<16x512xf32, #tpu.memory_space<vmem>>, vector<16x512xf32>
    %c0_1 = arith.constant 0 : index
    %c0_2 = arith.constant 0 : index
    %1 = vector.load %arg2[%c0_1, %c0_2] : memref<512x128xf32, #tpu.memory_space<vmem>>, vector<512x128xf32>
    %cst = arith.constant dense<0.000000e+00> : vector<16x128xf32>
    %2 = tpu.matmul %0, %1, %cst {dimension_numbers = #tpu.dot_dimension_numbers<[1], [0], [0], [1], [0, 0, 1, 1], [], []>} : vector<16x512xf32>, vector<512x128xf32>, vector<16x128xf32> -> vector<16x128xf32>
    %3 = arith.negf %2 : vector<16x128xf32>
    %4 = math.exp %3 : vector<16x128xf32>
    %cst_3 = arith.constant 1.000000e+00 : f32
    %5 = vector.broadcast %cst_3 : f32 to vector<16x128xf32>
    %6 = arith.addf %5, %4 : vector<16x128xf32>
    %7 = arith.divf %5, %6 : vector<16x128xf32>
    %8 = arith.mulf %2, %7 : vector<16x128xf32>
    %c0_4 = arith.constant 0 : index
    %c0_5 = arith.constant 0 : index
    %9 = vector.load %arg3[%c0_4, %c0_5] : memref<16x128xf32, #tpu.memory_space<vmem>>, vector<16x128xf32>
    tpu.vector_store %arg3[%c0_4, %c0_5], %8 {strides = array<i32>} : memref<16x128xf32, #tpu.memory_space<vmem>>, vector<16x128xf32>,
    return
  }
  func.func @transform_0(%arg0: i32) -> (i32, i32) {
    %c0_i32 = arith.constant 0 : i32
    %c0_i32_0 = arith.constant 0 : i32
    return %arg0, %c0_i32 : i32, i32
  }
  func.func @transform_1(%arg0: i32) -> (i32, i32) {
    %c0_i32 = arith.constant 0 : i32
    %c0_i32_0 = arith.constant 0 : i32
    %c0_i32_1 = arith.constant 0 : i32
    return %c0_i32, %c0_i32_0 : i32, i32
  }
  func.func @transform_2(%arg0: i32) -> (i32, i32) {
    %c0_i32 = arith.constant 0 : i32
    %c0_i32_0 = arith.constant 0 : i32
    return %arg0, %c0_i32 : i32, i32
  }
}

</mosaic_0001>

<llo_original>
// kernel: netb_forward.1
$region0: #{netb_forward.1}
  #allocation0 [shape = 'u32[]', space=smem, size = 0x4, offset = 0x4, fixed_abs, tag = 'smem constant byte address 0x4 - core index']
  #allocation1 [shape = 'u32[144,128]{1,0:T(1,128)}', space=vmem, size = 0x12000, scoped, tag = 'internal scratch']
  %s0 = inlined_call_operand.hbm [shape: f32[16,512], index: 0, kind: input, shape index: {}]
  %s1 = inlined_call_operand.hbm [shape: f32[512,128], index: 1, kind: input, shape index: {}]
  %s2 = inlined_call_operand.hbm [shape: f32[16,128], index: 2, kind: output, shape index: {}]
  %s3 = sld [smem:[#allocation0]]
  $region26: #{netb_forward.1} parent=0
    _
  %s5 = ssub.s32 1, %s3
  %s6 = scalar_select 0, %s5, %s3
  $region1: #{netb_forward.1} parent=0
    #allocation2 [shape = 'u8[32768]{0}', space=vmem, size = 0x8000, scoped, tag = 'input window, operand 0, single buffered']
    #allocation3 [shape = 's32[1]{0}', space=sflag, size = 0x4, scoped, tag = 'scoped memory for netb_forward.1']
    #allocation4 [shape = 's32[1]{0}', space=sflag, size = 0x4, scoped, tag = 'scoped memory for netb_forward.1']
    #allocation5 [shape = 'u8[262144]{0}', space=vmem, size = 0x40000, scoped, tag = 'input window, operand 1, single buffered']
    #allocation6 [shape = 's32[1]{0}', space=sflag, size = 0x4, scoped, tag = 'scoped memory for netb_forward.1']
    #allocation7 [shape = 'u8[8192]{0}', space=vmem, size = 0x2000, scoped, tag = 'output window, operand 0, single buffered']
    %7 = vsyncpa [#allocation3], 0
    %8 = vsyncpa [#allocation6], 0
    %9 = vsyncpa [#allocation4], 0
    // Predicated region
    $region2: #{netb_forward.1} parent=1 // pred_check
      _
    $region3: #{netb_forward.1} parent=1 // pred_check_branch
      %11 = sbr.rel (0) target = $region5
    $region4: #{netb_forward.1} parent=1 // pred_region
      %s13 = ssub.s32 1024, 1024
      %14 = vsyncadd [#allocation3], %s13
      %s15 = sshll.u32 [#allocation2], 4
      %s16 = int_to_ptr.vmem [resolvable:$true] %s15
      %21 = dma.hbm_to_vmem [thread:$0]  %s0, 1024, %s16, [#allocation3], 512, 512, 32
    $region5: #{netb_forward.1} parent=1 // pred_fallthru
      _
    // Predicated region
    $region6: #{netb_forward.1} parent=1 // pred_check
      _
    $region7: #{netb_forward.1} parent=1 // pred_check_branch
      %23 = sbr.rel (0) target = $region9
    $region8: #{netb_forward.1} parent=1 // pred_region
      %s25 = ssub.s32 8192, 8192
      %26 = vsyncadd [#allocation6], %s25
      %s27 = sshll.u32 [#allocation5], 4
      %s28 = int_to_ptr.vmem [resolvable:$true] %s27
      %33 = dma.hbm_to_vmem [thread:$0]  %s1, 8192, %s28, [#allocation6], 128, 128, 8
    $region9: #{netb_forward.1} parent=1 // pred_fallthru
      _
    // Predicated region
    $region10: #{netb_forward.1} parent=1 // pred_check
      _
    $region11: #{netb_forward.1} parent=1 // pred_check_branch
      %35 = sbr.rel (0) target = $region13
    $region12: #{netb_forward.1} parent=1 // pred_region
      %36 = dma.done [#allocation3], 1024
    $region13: #{netb_forward.1} parent=1 // pred_fallthru
      _
    // Predicated region
    $region14: #{netb_forward.1} parent=1 // pred_check
      _
    $region15: #{netb_forward.1} parent=1 // pred_check_branch
      %38 = sbr.rel (0) target = $region17
    $region16: #{netb_forward.1} parent=1 // pred_region
      %39 = dma.done [#allocation6], 8192
    $region17: #{netb_forward.1} parent=1 // pred_fallthru
      _
    %v40 = vld [vmem:[#allocation2] sm:$0xff]
    %v41 = vld [vmem:[#allocation2 + $0x8] sm:$0xff]
    %v42 = vld [vmem:[#allocation2 + $0x10] sm:$0xff]
    %v43 = vld [vmem:[#allocation2 + $0x18] sm:$0xff]
    %v44 = vld [vmem:[#allocation2 + $0x20] sm:$0xff]
    %v45 = vld [vmem:[#allocation2 + $0x28] sm:$0xff]
    %v46 = vld [vmem:[#allocation2 + $0x30] sm:$0xff]
    %v47 = vld [vmem:[#allocation2 + $0x38] sm:$0xff]
    %v48 = vld [vmem:[#allocation5] sm:$0xff]
    %v49 = vld [vmem:[#allocation5 + $0x8] sm:$0xff]
    %v50 = vld [vmem:[#allocation5 + $0x10] sm:$0xff]
    %v51 = vld [vmem:[#allocation5 + $0x18] sm:$0xff]
    %v52 = vld [vmem:[#allocation5 + $0x20] sm:$0xff]
    %v53 = vld [vmem:[#allocation5 + $0x28] sm:$0xff]
    %v54 = vld [vmem:[#allocation5 + $0x30] sm:$0xff]
    %v55 = vld [vmem:[#allocation5 + $0x38] sm:$0xff]
    %v56 = vld [vmem:[#allocation5 + $0x40] sm:$0xff]
    %v57 = vld [vmem:[#allocation5 + $0x48] sm:$0xff]
    %v58 = vld [vmem:[#allocation5 + $0x50] sm:$0xff]
    %v59 = vld [vmem:[#allocation5 + $0x58] sm:$0xff]
    %v60 = vld [vmem:[#allocation5 + $0x60] sm:$0xff]
    %v61 = vld [vmem:[#allocation5 + $0x68] sm:$0xff]
    %v62 = vld [vmem:[#allocation5 + $0x70] sm:$0xff]
    %v63 = vld [vmem:[#allocation5 + $0x78] sm:$0xff]
    %v64 = vld [vmem:[#allocation5 + $0x80] sm:$0xff]
    %v65 = vld [vmem:[#allocation5 + $0x88] sm:$0xff]
    %v66 = vld [vmem:[#allocation5 + $0x90] sm:$0xff]
    %v67 = vld [vmem:[#allocation5 + $0x98] sm:$0xff]
    %v68 = vld [vmem:[#allocation5 + $0xa0] sm:$0xff]
    %v69 = vld [vmem:[#allocation5 + $0xa8] sm:$0xff]
    %v70 = vld [vmem:[#allocation5 + $0xb0] sm:$0xff]
    %v71 = vld [vmem:[#allocation5 + $0xb8] sm:$0xff]
    %v72 = vld [vmem:[#allocation5 + $0xc0] sm:$0xff]
    %v73 = vld [vmem:[#allocation5 + $0xc8] sm:$0xff]
    %v74 = vld [vmem:[#allocation5 + $0xd0] sm:$0xff]
    %v75 = vld [vmem:[#allocation5 + $0xd8] sm:$0xff]
    %v76 = vld [vmem:[#allocation5 + $0xe0] sm:$0xff]
    %v77 = vld [vmem:[#allocation5 + $0xe8] sm:$0xff]
    %v78 = vld [vmem:[#allocation5 + $0xf0] sm:$0xff]
    %v79 = vld [vmem:[#allocation5 + $0xf8] sm:$0xff]
    %v80 = vld [vmem:[#allocation5 + $0x100] sm:$0xff]
    %v81 = vld [vmem:[#allocation5 + $0x108] sm:$0xff]
    %v82 = vld [vmem:[#allocation5 + $0x110] sm:$0xff]
    %v83 = vld [vmem:[#allocation5 + $0x118] sm:$0xff]
    %v84 = vld [vmem:[#allocation5 + $0x120] sm:$0xff]
    %v85 = vld [vmem:[#allocation5 + $0x128] sm:$0xff]
    %v86 = vld [vmem:[#allocation5 + $0x130] sm:$0xff]
    %v87 = vld [vmem:[#allocation5 + $0x138] sm:$0xff]
    %v88 = vld [vmem:[#allocation5 + $0x140] sm:$0xff]
    %v89 = vld [vmem:[#allocation5 + $0x148] sm:$0xff]
    %v90 = vld [vmem:[#allocation5 + $0x150] sm:$0xff]
    %v91 = vld [vmem:[#allocation5 + $0x158] sm:$0xff]
    %v92 = vld [vmem:[#allocation5 + $0x160] sm:$0xff]
    %v93 = vld [vmem:[#allocation5 + $0x168] sm:$0xff]
    %v94 = vld [vmem:[#allocation5 + $0x170] sm:$0xff]
    %v95 = vld [vmem:[#allocation5 + $0x178] sm:$0xff]
    %v96 = vld [vmem:[#allocation5 + $0x180] sm:$0xff]
    %v97 = vld [vmem:[#allocation5 + $0x188] sm:$0xff]
    %v98 = vld [vmem:[#allocation5 + $0x190] sm:$0xff]
    %v99 = vld [vmem:[#allocation5 + $0x198] sm:$0xff]
    %v100 = vld [vmem:[#allocation5 + $0x1a0] sm:$0xff]
    %v101 = vld [vmem:[#allocation5 + $0x1a8] sm:$0xff]
    %v102 = vld [vmem:[#allocation5 + $0x1b0] sm:$0xff]
    %v103 = vld [vmem:[#allocation5 + $0x1b8] sm:$0xff]
    %v104 = vld [vmem:[#allocation5 + $0x1c0] sm:$0xff]
    %v105 = vld [vmem:[#allocation5 + $0x1c8] sm:$0xff]
    %v106 = vld [vmem:[#allocation5 + $0x1d0] sm:$0xff]
    %v107 = vld [vmem:[#allocation5 + $0x1d8] sm:$0xff]
    %v108 = vld [vmem:[#allocation5 + $0x1e0] sm:$0xff]
    %v109 = vld [vmem:[#allocation5 + $0x1e8] sm:$0xff]
    %v110 = vld [vmem:[#allocation5 + $0x1f0] sm:$0xff]
    %v111 = vld [vmem:[#allocation5 + $0x1f8] sm:$0xff]
    %112 = vmatprep.subr.mxu0 0.0
    %113 = vmatpush1.msra.mxu0 %v48
    %114 = vmatprep.subr.mxu0 0.0
    %115 = vmatpush1.msra.mxu0 %v49
    %116 = vmatprep.subr.mxu0 0.0
    %117 = vmatpush1.msra.mxu0 %v50
    %118 = vmatprep.subr.mxu0 0.0
    %119 = vmatpush1.msra.mxu0 %v51
    %120 = vmatprep.subr.mxu0 0.0
    %121 = vmatpush1.msra.mxu0 %v52
    %122 = vmatprep.subr.mxu0 0.0
    %123 = vmatpush1.msra.mxu0 %v53
    %124 = vmatprep.subr.mxu0 0.0
    %125 = vmatpush1.msra.mxu0 %v54
    %126 = vmatprep.subr.mxu0 0.0
    %127 = vmatpush1.msra.mxu0 %v55
    %128 = vmatprep.subr.mxu0 0.0
    %129 = vmatpush1.msra.mxu0 %v56
    %130 = vmatprep.subr.mxu0 0.0
    %131 = vmatpush1.msra.mxu0 %v57
    %132 = vmatprep.subr.mxu0 0.0
    %133 = vmatpush1.msra.mxu0 %v58
    %134 = vmatprep.subr.mxu0 0.0
    %135 = vmatpush1.msra.mxu0 %v59
    %136 = vmatprep.subr.mxu0 0.0
    %137 = vmatpush1.msra.mxu0 %v60
    %138 = vmatprep.subr.mxu0 0.0
    %139 = vmatpush1.msra.mxu0 %v61
    %140 = vmatprep.subr.mxu0 0.0
    %141 = vmatpush1.msra.mxu0 %v62
    %142 = vmatprep.subr.mxu0 0.0
    %143 = vmatpush1.msra.mxu0 %v63
    %144 = vmatprep.subr.mxu0 0.0
    %145 = vmatpush1.msra.mxu0 %v64
    %146 = vmatprep.subr.mxu0 0.0
    %147 = vmatpush1.msra.mxu0 %v65
    %148 = vmatprep.subr.mxu0 0.0
    %149 = vmatpush1.msra.mxu0 %v66
    %150 = vmatprep.subr.mxu0 0.0
    %151 = vmatpush1.msra.mxu0 %v67
    %152 = vmatprep.subr.mxu0 0.0
    %153 = vmatpush1.msra.mxu0 %v68
    %154 = vmatprep.subr.mxu0 0.0
    %155 = vmatpush1.msra.mxu0 %v69
    %156 = vmatprep.subr.mxu0 0.0
    %157 = vmatpush1.msra.mxu0 %v70
    %158 = vmatprep.subr.mxu0 0.0
    %159 = vmatpush1.msra.mxu0 %v71
    %160 = vmatprep.subr.mxu0 0.0
    %161 = vmatpush1.msra.mxu0 %v72
    %162 = vmatprep.subr.mxu0 0.0
    %163 = vmatpush1.msra.mxu0 %v73
    %164 = vmatprep.subr.mxu0 0.0
    %165 = vmatpush1.msra.mxu0 %v74
    %166 = vmatprep.subr.mxu0 0.0
    %167 = vmatpush1.msra.mxu0 %v75
    %168 = vmatprep.subr.mxu0 0.0
    %169 = vmatpush1.msra.mxu0 %v76
    %170 = vmatprep.subr.mxu0 0.0
    %171 = vmatpush1.msra.mxu0 %v77
    %172 = vmatprep.subr.mxu0 0.0
    %173 = vmatpush1.msra.mxu0 %v78
    %174 = vmatprep.subr.mxu0 0.0
    %175 = vmatpush1.msra.mxu0 %v79
    %176 = vmatprep.mubr.f32.mxu0 %v41
    %177 = vmatmul.mubr.f32.gmra.mrb[0].mxu0 %v40
    %v178 = vpop.f32.mrb[0].mxu0
    %v179 = vadd.f32 0.0, %v178
    %v180 = vpop.f32.mrb[0].mxu0
    %181 = vmatprep.mubr.f32.mxu0 %v45
    %182 = vmatmul.mubr.f32.gmra.mrb[0].mxu0 %v44
    %v183 = vpop.f32.mrb[0].mxu0
    %v184 = vadd.f32 0.0, %v183
    %v185 = vpop.f32.mrb[0].mxu0
    %186 = vdwg.mxu0
    %187 = vmatprep.subr.mxu0 0.0
    %188 = vmatpush1.msra.mxu0 %v80
    %189 = vmatprep.subr.mxu0 0.0
    %190 = vmatpush1.msra.mxu0 %v81
    %191 = vmatprep.subr.mxu0 0.0
    %192 = vmatpush1.msra.mxu0 %v82
    %193 = vmatprep.subr.mxu0 0.0
    %194 = vmatpush1.msra.mxu0 %v83
    %195 = vmatprep.subr.mxu0 0.0
    %196 = vmatpush1.msra.mxu0 %v84
    %197 = vmatprep.subr.mxu0 0.0
    %198 = vmatpush1.msra.mxu0 %v85
    %199 = vmatprep.subr.mxu0 0.0
    %200 = vmatpush1.msra.mxu0 %v86
    %201 = vmatprep.subr.mxu0 0.0
    %202 = vmatpush1.msra.mxu0 %v87
    %203 = vmatprep.subr.mxu0 0.0
    %204 = vmatpush1.msra.mxu0 %v88
    %205 = vmatprep.subr.mxu0 0.0
    %206 = vmatpush1.msra.mxu0 %v89
    %207 = vmatprep.subr.mxu0 0.0
    %208 = vmatpush1.msra.mxu0 %v90
    %209 = vmatprep.subr.mxu0 0.0
    %210 = vmatpush1.msra.mxu0 %v91
    %211 = vmatprep.subr.mxu0 0.0
    %212 = vmatpush1.msra.mxu0 %v92
    %213 = vmatprep.subr.mxu0 0.0
    %214 = vmatpush1.msra.mxu0 %v93
    %215 = vmatprep.subr.mxu0 0.0
    %216 = vmatpush1.msra.mxu0 %v94
    %217 = vmatprep.subr.mxu0 0.0
    %218 = vmatpush1.msra.mxu0 %v95
    %219 = vmatprep.subr.mxu0 0.0
    %220 = vmatpush1.msra.mxu0 %v96
    %221 = vmatprep.subr.mxu0 0.0
    %222 = vmatpush1.msra.mxu0 %v97
    %223 = vmatprep.subr.mxu0 0.0
    %224 = vmatpush1.msra.mxu0 %v98
    %225 = vmatprep.subr.mxu0 0.0
    %226 = vmatpush1.msra.mxu0 %v99
    %227 = vmatprep.subr.mxu0 0.0
    %228 = vmatpush1.msra.mxu0 %v100
    %229 = vmatprep.subr.mxu0 0.0
    %230 = vmatpush1.msra.mxu0 %v101
    %231 = vmatprep.subr.mxu0 0.0
    %232 = vmatpush1.msra.mxu0 %v102
    %233 = vmatprep.subr.mxu0 0.0
    %234 = vmatpush1.msra.mxu0 %v103
    %235 = vmatprep.subr.mxu0 0.0
    %236 = vmatpush1.msra.mxu0 %v104
    %237 = vmatprep.subr.mxu0 0.0
    %238 = vmatpush1.msra.mxu0 %v105
    %239 = vmatprep.subr.mxu0 0.0
    %240 = vmatpush1.msra.mxu0 %v106
    %241 = vmatprep.subr.mxu0 0.0
    %242 = vmatpush1.msra.mxu0 %v107
    %243 = vmatprep.subr.mxu0 0.0
    %244 = vmatpush1.msra.mxu0 %v108
    %245 = vmatprep.subr.mxu0 0.0
    %246 = vmatpush1.msra.mxu0 %v109
    %247 = vmatprep.subr.mxu0 0.0
    %248 = vmatpush1.msra.mxu0 %v110
    %249 = vmatprep.subr.mxu0 0.0
    %250 = vmatpush1.msra.mxu0 %v111
    %251 = vmatprep.mubr.f32.mxu0 %v43
    %252 = vmatmul.mubr.f32.gmra.mrb[0].mxu0 %v42
    %v253 = vpop.f32.mrb[0].mxu0
    %v254 = vadd.f32 %v179, %v253
    %v255 = vpop.f32.mrb[0].mxu0
    %256 = vmatprep.mubr.f32.mxu0 %v47
    %257 = vmatmul.mubr.f32.gmra.mrb[0].mxu0 %v46
    %v258 = vpop.f32.mrb[0].mxu0
    %v259 = vadd.f32 %v184, %v258
    %v260 = vpop.f32.mrb[0].mxu0
    %261 = vdwg.mxu0
    %v262 = vxor.u32 %v254, 2147483648
    %v263 = vxor.u32 %v259, 2147483648
    %v264 = vmul.f32 %v262, 1.442695
    %v265 = vpow.pop %v264
    %v266 = vmul.f32 %v263, 1.442695
    %v267 = vpow.pop %v266
    %v268 = vadd.f32 %v265, 1.0
    %v269 = vadd.f32 %v267, 1.0
    %v270 = vrcp.pop %v268
    %v271 = vmul.f32 1.0, %v270
    %v272 = vrcp.pop %v269
    %v273 = vmul.f32 1.0, %v272
    %v274 = vmul.f32 %v254, %v271
    %v275 = vmul.f32 %v259, %v273
    %276 = vst [vmem:[#allocation7] sm:$0xff] %v274
    %277 = vst [vmem:[#allocation7 + $0x8] sm:$0xff] %v275
    // Predicated region
    $region18: #{netb_forward.1} parent=1 // pred_check
      _
    $region19: #{netb_forward.1} parent=1 // pred_check_branch
      %279 = sbr.rel (0) target = $region21
    $region20: #{netb_forward.1} parent=1 // pred_region
      %s281 = ssub.s32 256, 256
      %282 = vsyncadd [#allocation4], %s281
      %s283 = sshll.u32 [#allocation7], 4
      %s284 = int_to_ptr.vmem [resolvable:$true] %s283
      %289 = dma.vmem_to_hbm [thread:$0]  %s284, 256, %s2, [#allocation4], 128, 128, 8
    $region21: #{netb_forward.1} parent=1 // pred_fallthru
      _
    // Predicated region
    $region22: #{netb_forward.1} parent=1 // pred_check
      _
    $region23: #{netb_forward.1} parent=1 // pred_check_branch
      %291 = sbr.rel (0) target = $region25
    $region24: #{netb_forward.1} parent=1 // pred_region
      %292 = dma.done [#allocation4], 256
    $region25: #{netb_forward.1} parent=1 // pred_fallthru
      _
    %293 = vsyncpa [#allocation3], 1
    %294 = vsyncpa [#allocation6], 1
    %295 = vsyncpa [#allocation4], 1

</llo_original>
